<compile_context>
chip_gen: v5e
topology: v5e:2x2
jax: 0.10.0
libtpu: 0.0.40
codegen_flags: <defaults>
</compile_context>

<pallas_src>
import functools

import jax
import jax.numpy as jnp
from jax.experimental import pallas as pl
from jax.experimental.pallas import tpu as pltpu


def _make_residual_kernel(C: int, Bblk: int, use_mxu: bool, mxu_precision):
    """o = gelu(W @ x + b) + x on a (Bblk, C, tn) block: channels on sublanes,
    spatial on lanes, batch folded into the leading block dim."""

    def kernel(x_ref, w_ref, b_ref, o_ref):
        w = w_ref[...]                                   # (C, C)
        bias = b_ref[...].astype(jnp.float32)            # (C, 1)

        if use_mxu:
            # Large C: one MXU matmul per batch row of the block (Bblk is
            # capped small on this path).  Precision chosen in the wrapper.
            for bb in range(Bblk):
                xb = x_ref[bb]                            # (C, tn)
                hb = jnp.dot(w, xb,
                             preferred_element_type=jnp.float32,
                             precision=mxu_precision)
                hb = jax.nn.gelu(hb + bias, approximate=True)   # EUP slot
                o_ref[bb] = (hb + xb.astype(jnp.float32)).astype(o_ref.dtype)
        else:
            # Tiny C: a K=C matmul wastes the systolic array -> unrolled VPU
            # FMAs, vectorized over the batch dim of the block, with up to 4
            # partial accumulators for ILP across the VALUs.
            x = x_ref[...]                                # (Bblk, C, tn)
            xf = x.astype(jnp.float32)
            wf = w.astype(jnp.float32)
            n_par = min(C, 4)
            partials = []
            for p in range(n_par):
                acc = wf[:, p:p + 1][None] * xf[:, p:p + 1, :]   # (Bb,C,tn)
                for c in range(p + n_par, C, n_par):
                    acc = acc + wf[:, c:c + 1][None] * xf[:, c:c + 1, :]
                partials.append(acc)
            while len(partials) > 1:                      # pairwise tree sum
                nxt = [partials[i] + partials[i + 1]
                       for i in range(0, len(partials) - 1, 2)]
                if len(partials) % 2:
                    nxt.append(partials[-1])
                partials = nxt
            h = partials[0] + bias[None]                  # (1,C,1) broadcast
            h = jax.nn.gelu(h, approximate=True)          # EUP slot
            o_ref[...] = (h + xf).astype(o_ref.dtype)

    return kernel


@functools.partial(jax.jit, static_argnames=("block_target_bytes",),
                   donate_argnums=(0,))
def residual_pointwise(x_nchw, w, b, *, block_target_bytes=2 << 20):
    """Residual(fn)(x) with fn = gelu(1x1 conv); W is [out_ch, in_ch]. x: [B,C,H,W]."""
    B, C, H, W = x_nchw.shape
    N = H * W
    x3 = x_nchw.reshape(B, C, N)          # free reshape, no transpose / HBM pass
    b2 = b.reshape(C, 1)

    itemsize = jnp.dtype(x_nchw.dtype).itemsize
    n_pad = pl.cdiv(N, 128) * 128

    # --- Adaptive block sizing (HBM-bound => make every grid step multi-MiB) ---
    # Spatial tile: multiple of 128 lanes, sized so C*tn*itemsize ~ budget.
    tn = (block_target_bytes // (C * itemsize)) // 128 * 128
    tn = max(128, min(tn, n_pad))
    # Fold batch into the block until the byte budget is reached (small-C case).
    Bblk = max(1, min(B, block_target_bytes // (C * tn * itemsize)))

    use_mxu = C >= 64
    if use_mxu:
        Bblk = min(Bblk, 8)   # MXU path unrolls over batch; bound code size.

    # v7x megacore: guarantee >= 2 parallel blocks whenever the problem splits.
    if pl.cdiv(B, Bblk) * pl.cdiv(N, tn) < 2:
        if Bblk > 1:
            Bblk = pl.cdiv(Bblk, 2)
        elif tn > 128:
            tn = max(128, (tn // 2) // 128 * 128)

    grid = (pl.cdiv(B, Bblk), pl.cdiv(N, tn))   # cdiv grid: no divisibility assert

    # --- VMEM budget ---
    blk_bytes = Bblk * C * tn * itemsize
    w_bytes = C * C * jnp.dtype(w.dtype).itemsize
    b_bytes = C * jnp.dtype(b.dtype).itemsize
    single_buffer_w = C >= 512            # constant index_map: double-buffer is waste
    w_bufs = 1 if single_buffer_w else 2
    f32_blk = Bblk * C * tn * 4
    needed = (2 * blk_bytes               # double-buffered input windows
              + 2 * blk_bytes             # double-buffered output windows
              + w_bufs * w_bytes + 2 * b_bytes
              + 6 * f32_blk               # full-block f32 intermediates in the body
              + (2 << 20))                # compiler scratch headroom
    try:
        phys_vmem = int(pltpu.get_tpu_info().vmem_capacity_bytes)
    except Exception:                      # pragma: no cover - conservative fallback
        phys_vmem = 64 << 20               # v7x per-TensorCore size
    vmem_cap = max(32 << 20, phys_vmem - (16 << 20))   # ~48 MiB v7x, ~112 MiB v5e/v6e
    vmem_limit = int(min(vmem_cap, max(needed, 32 << 20)))

    # Explicit matmul precision on the MXU path: match the f32 reference for
    # f32 inputs, single bf16 pass (f32 accumulate) for bf16 inputs.
    mxu_precision = (jax.lax.Precision.HIGHEST
                     if x_nchw.dtype == jnp.float32 else jax.lax.Precision.DEFAULT)

    w_spec_kwargs = dict(pipeline_mode=pl.Buffered(1)) if single_buffer_w else {}
    w_spec = pl.BlockSpec((C, C), lambda bi, j: (0, 0), **w_spec_kwargs)

    out3 = pl.pallas_call(
        _make_residual_kernel(C, Bblk, use_mxu, mxu_precision),
        out_shape=jax.ShapeDtypeStruct((B, C, N), x3.dtype),
        grid_spec=pltpu.PrefetchScalarGridSpec(
            num_scalar_prefetch=0,
            grid=grid,
            in_specs=[
                pl.BlockSpec((Bblk, C, tn), lambda bi, j: (bi, 0, j)),  # x tile
                w_spec,                                                  # W (resident)
                pl.BlockSpec((C, 1), lambda bi, j: (0, 0)),              # bias (resident)
            ],
            out_specs=pl.BlockSpec((Bblk, C, tn), lambda bi, j: (bi, 0, j)),
        ),
        input_output_aliases={0: 0},       # write the result in place of the x slab
        compiler_params=pltpu.CompilerParams(
            dimension_semantics=("parallel", "parallel"),
            vmem_limit_bytes=vmem_limit),
    )(x3, w, b2)

    return out3.reshape(B, C, H, W)


def _reference(x_nchw, w, b):
    """Pure-JAX reference: Residual(fn)(x) = fn(x) + x, fn = gelu(1x1 conv)."""
    B, C, H, W = x_nchw.shape
    xf = x_nchw.astype(jnp.float32).reshape(B, C, H * W)
    h = jnp.einsum("oc,bcn->bon", w.astype(jnp.float32), xf,
                   precision=jax.lax.Precision.HIGHEST)
    h = jax.nn.gelu(h + b.astype(jnp.float32)[None, :, None], approximate=True) + xf
    return h.reshape(B, C, H, W).astype(x_nchw.dtype)


if __name__ == "__main__":
    key = jax.random.PRNGKey(0)
    kx, kw, kb = jax.random.split(key, 3)

    B, C, H, W = 2, 4, 16, 16
    x = jax.random.normal(kx, (B, C, H, W), dtype=jnp.float32)

    # Deterministic parameters for the wrapped fn (1x1 conv, [out_ch, in_ch]).
    w = jax.random.normal(kw, (C, C), dtype=jnp.float32) * 0.1
    b = jax.random.normal(kb, (C,), dtype=jnp.float32) * 0.1

    ref = jax.block_until_ready(_reference(x, w, b))   # before x is donated below
    out = jax.block_until_ready(residual_pointwise(x, w, b))

    assert out.shape == ref.shape and out.dtype == ref.dtype
    assert jnp.allclose(out, ref, atol=1e-5, rtol=1e-5)

    print("KERNEL_OK")
</pallas_src>

<mosaic_0001>
module attributes {stable_mosaic.version = 11 : i64} {
  func.func @kernel(%arg0: i32, %arg1: i32, %arg2: memref<1x4x256xf32, #tpu.memory_space<vmem>>, %arg3: memref<4x4xf32, #tpu.memory_space<vmem>>, %arg4: memref<4x1xf32, #tpu.memory_space<vmem>>, %arg5: memref<1x4x256xf32, #tpu.memory_space<vmem>>) attributes {dimension_semantics = [#tpu.dimension_semantics<parallel>, #tpu.dimension_semantics<parallel>], iteration_bounds = array<i64: 2, 1>, scalar_prefetch = 0 : i64, scratch_operands = 0 : i64, tpu.core_type = #tpu.core_type<tc>, window_params = [{transform_indices = @transform_0, window_bounds = array<i64: 1, 4, 256>}, {pipeline_mode = #tpu.pipeline_mode<synchronous>, transform_indices = @transform_1, window_bounds = array<i64: 4, 4>}, {pipeline_mode = #tpu.pipeline_mode<synchronous>, transform_indices = @transform_2, window_bounds = array<i64: 4, 1>}, {transform_indices = @transform_3, window_bounds = array<i64: 1, 4, 256>}]} {
    %c0 = arith.constant 0 : index
    %c0_0 = arith.constant 0 : index
    %0 = vector.load %arg3[%c0, %c0_0] : memref<4x4xf32, #tpu.memory_space<vmem>>, vector<4x4xf32>
    %c0_1 = arith.constant 0 : index
    %c0_2 = arith.constant 0 : index
    %1 = vector.load %arg4[%c0_1, %c0_2] : memref<4x1xf32, #tpu.memory_space<vmem>>, vector<4x1xf32>
    %c0_3 = arith.constant 0 : index
    %c0_4 = arith.constant 0 : index
    %c0_5 = arith.constant 0 : index
    %2 = vector.load %arg2[%c0_3, %c0_4, %c0_5] : memref<1x4x256xf32, #tpu.memory_space<vmem>>, vector<1x4x256xf32>
    %3 = vector.extract_strided_slice %0 {offsets = [0, 0], sizes = [4, 1], strides = [1, 1]} : vector<4x4xf32> to vector<4x1xf32>
    %4 = vector.shape_cast %3 : vector<4x1xf32> to vector<1x4x1xf32>
    %5 = vector.extract_strided_slice %2 {offsets = [0, 0, 0], sizes = [1, 1, 256], strides = [1, 1, 1]} : vector<1x4x256xf32> to vector<1x1x256xf32>
    %6 = vector.broadcast %4 : vector<1x4x1xf32> to vector<1x4x256xf32>
    %7 = vector.broadcast %5 : vector<1x1x256xf32> to vector<1x4x256xf32>
    %8 = arith.mulf %6, %7 : vector<1x4x256xf32>
    %9 = vector.extract_strided_slice %0 {offsets = [0, 1], sizes = [4, 1], strides = [1, 1]} : vector<4x4xf32> to vector<4x1xf32>
    %10 = vector.shape_cast %9 : vector<4x1xf32> to vector<1x4x1xf32>
    %11 = vector.extract_strided_slice %2 {offsets = [0, 1, 0], sizes = [1, 1, 256], strides = [1, 1, 1]} : vector<1x4x256xf32> to vector<1x1x256xf32>
    %12 = vector.broadcast %10 : vector<1x4x1xf32> to vector<1x4x256xf32>
    %13 = vector.broadcast %11 : vector<1x1x256xf32> to vector<1x4x256xf32>
    %14 = arith.mulf %12, %13 : vector<1x4x256xf32>
    %15 = vector.extract_strided_slice %0 {offsets = [0, 2], sizes = [4, 1], strides = [1, 1]} : vector<4x4xf32> to vector<4x1xf32>
    %16 = vector.shape_cast %15 : vector<4x1xf32> to vector<1x4x1xf32>
    %17 = vector.extract_strided_slice %2 {offsets = [0, 2, 0], sizes = [1, 1, 256], strides = [1, 1, 1]} : vector<1x4x256xf32> to vector<1x1x256xf32>
    %18 = vector.broadcast %16 : vector<1x4x1xf32> to vector<1x4x256xf32>
    %19 = vector.broadcast %17 : vector<1x1x256xf32> to vector<1x4x256xf32>
    %20 = arith.mulf %18, %19 : vector<1x4x256xf32>
    %21 = vector.extract_strided_slice %0 {offsets = [0, 3], sizes = [4, 1], strides = [1, 1]} : vector<4x4xf32> to vector<4x1xf32>
    %22 = vector.shape_cast %21 : vector<4x1xf32> to vector<1x4x1xf32>
    %23 = vector.extract_strided_slice %2 {offsets = [0, 3, 0], sizes = [1, 1, 256], strides = [1, 1, 1]} : vector<1x4x256xf32> to vector<1x1x256xf32>
    %24 = vector.broadcast %22 : vector<1x4x1xf32> to vector<1x4x256xf32>
    %25 = vector.broadcast %23 : vector<1x1x256xf32> to vector<1x4x256xf32>
    %26 = arith.mulf %24, %25 : vector<1x4x256xf32>
    %27 = arith.addf %8, %14 : vector<1x4x256xf32>
    %28 = arith.addf %20, %26 : vector<1x4x256xf32>
    %29 = arith.addf %27, %28 : vector<1x4x256xf32>
    %30 = vector.shape_cast %1 : vector<4x1xf32> to vector<1x4x1xf32>
    %31 = vector.broadcast %30 : vector<1x4x1xf32> to vector<1x4x256xf32>
    %32 = arith.addf %29, %31 : vector<1x4x256xf32>
    %33 = arith.mulf %32, %32 : vector<1x4x256xf32>
    %34 = arith.mulf %32, %33 : vector<1x4x256xf32>
    %cst = arith.constant 4.471500e-02 : f32
    %35 = vector.broadcast %cst : f32 to vector<1x4x256xf32>
    %36 = arith.mulf %35, %34 : vector<1x4x256xf32>
    %37 = arith.addf %32, %36 : vector<1x4x256xf32>
    %cst_6 = arith.constant 0.797884583 : f32
    %38 = vector.broadcast %cst_6 : f32 to vector<1x4x256xf32>
    %39 = arith.mulf %38, %37 : vector<1x4x256xf32>
    %40 = math.tanh %39 : vector<1x4x256xf32>
    %cst_7 = arith.constant 1.000000e+00 : f32
    %41 = vector.broadcast %cst_7 : f32 to vector<1x4x256xf32>
    %42 = arith.addf %41, %40 : vector<1x4x256xf32>
    %cst_8 = arith.constant 5.000000e-01 : f32
    %43 = vector.broadcast %cst_8 : f32 to vector<1x4x256xf32>
    %44 = arith.mulf %43, %42 : vector<1x4x256xf32>
    %45 = arith.mulf %32, %44 : vector<1x4x256xf32>
    %46 = arith.addf %45, %2 : vector<1x4x256xf32>
    %c0_9 = arith.constant 0 : index
    %c0_10 = arith.constant 0 : index
    %c0_11 = arith.constant 0 : index
    %47 = vector.load %arg5[%c0_9, %c0_10, %c0_11] : memref<1x4x256xf32, #tpu.memory_space<vmem>>, vector<1x4x256xf32>
    tpu.vector_store %arg5[%c0_9, %c0_10, %c0_11], %46 {strides = array<i32>} : memref<1x4x256xf32, #tpu.memory_space<vmem>>, vector<1x4x256xf32>,
    return
  }
  func.func @transform_0(%arg0: i32, %arg1: i32) -> (i32, i32, i32) {
    %c0_i32 = arith.constant 0 : i32
    %c0_i32_0 = arith.constant 0 : i32
    return %arg0, %c0_i32, %arg1 : i32, i32, i32
  }
  func.func @transform_1(%arg0: i32, %arg1: i32) -> (i32, i32) {
    %c0_i32 = arith.constant 0 : i32
    %c0_i32_0 = arith.constant 0 : i32
    %c0_i32_1 = arith.constant 0 : i32
    return %c0_i32, %c0_i32_0 : i32, i32
  }
  func.func @transform_2(%arg0: i32, %arg1: i32) -> (i32, i32) {
    %c0_i32 = arith.constant 0 : i32
    %c0_i32_0 = arith.constant 0 : i32
    %c0_i32_1 = arith.constant 0 : i32
    return %c0_i32, %c0_i32_0 : i32, i32
  }
  func.func @transform_3(%arg0: i32, %arg1: i32) -> (i32, i32, i32) {
    %c0_i32 = arith.constant 0 : i32
    %c0_i32_0 = arith.constant 0 : i32
    return %arg0, %c0_i32, %arg1 : i32, i32, i32
  }
}

</mosaic_0001>

<llo_original>
// kernel: residual_pointwise.1
$region0: #{residual_pointwise.1}
  #allocation0 [shape = 'u32[]', space=smem, size = 0x4, offset = 0x4, fixed_abs, tag = 'smem constant byte address 0x4 - core index']
  #allocation1 [shape = 'u32[72,128]{1,0:T(1,128)}', space=vmem, size = 0x9000, scoped, tag = 'internal scratch']
  %s0 = inlined_call_operand.vmem [shape: f32[2,4,256], index: 0, kind: input, shape index: {}, may-alias: {0,3}]
  %s1 = inlined_call_operand.vmem [shape: f32[4,4], index: 1, kind: input, shape index: {}]
  %s2 = inlined_call_operand.vmem [shape: f32[4,1], index: 2, kind: input, shape index: {}]
  %s3 = inlined_call_operand.vmem [shape: f32[2,4,256], index: 3, kind: output, shape index: {}, may-alias: {0,3}]
  %s4 = sld [smem:[#allocation0]]
  $region45: #{residual_pointwise.1} parent=0
    _
  %s6 = ssub.s32 1, %s4
  %s7 = scalar_select 0, %s6, %s4
  loop: start=0, step=1, limit=4
  $region2: #{residual_pointwise.1} parent=0 // loop_pre_header
    _
  $region3: #{residual_pointwise.1} parent=0 // loop_header
    %s9 = sphi 0, %s13
    %p10 = scmp.ge.s32.totalorder %s9, 4
    %s16 = sphi 0, %s28
    %s17 = sphi 0, %s24
    %s18 = sphi 0, %s16
    %s19 = sphi 0, %s17
    %s20 = sphi 0, %s18
    %s21 = sphi 0, %s19
    %s33 = sphi 0, %s35
    %s36 = sphi 0, %s33
    %s37 = sphi 0, %s36
    %s53 = sphi 0, %s37
    %s57 = sphi 0, %s57
    %s59 = sphi 0, %s57
    %s60 = sphi 0, %s59
    %s74 = sphi 0, %s60
    %s78 = sphi 0, %s78
    %s80 = sphi 0, %s78
    %s81 = sphi 0, %s80
    %s95 = sphi 0, %s81
    %s103 = sphi 0, %s105
    %s106 = sphi 0, %s103
    %s107 = sphi 0, %s106
    %s123 = sphi 0, %s107
  $region4: #{residual_pointwise.1} parent=0 // loop_header_branch
    %12 = sbr.rel (%p10) target = $region8
  $region5: #{residual_pointwise.1} parent=0 // loop_body
    %s14 = ssub.s32 %s9, 1
    %s15 = ssub.s32 %s9, 2
    %s22 = sadd.s32 1, %s17
    %p23 = scmp.ge.s32.totalorder %s22, 1
    %s24 = scalar_select %p23, 0, %s22
    %s25 = sadd.s32 1, %s16
    %s26 = scalar_select %p23, %s25, %s16
    %p27 = scmp.ge.s32.totalorder %s26, 2
    %s28 = scalar_select %p27, 0, %s26
    %s29 = ssub.s32 %s16, %s28
    %s30 = ssub.s32 %s17, %s24
    %s31 = sor.u32 %s29, %s30
    %p32 = scmp.eq.s32.totalorder %s31, 0
    %s34 = sadd.s32 %s33, 1
    %s35 = scalar_select %p32, %s33, %s34
    %p38 = pneg %p32
    %p39 = scmp.eq.s32.totalorder %s9, 1
    %p40 = por %p38, %p39
    %p41 = scmp.ne.s32.totalorder %s33, %s36
    %p42 = scmp.eq.s32.totalorder %s9, 0
    %p43 = por %p41, %p42
    %p44 = scmp.ne.s32.totalorder %s33, %s36
    %p45 = scmp.eq.s32.totalorder %s14, 1
    %p46 = por %p44, %p45
    %p47 = scmp.ne.s32.totalorder %s36, %s37
    %p48 = scmp.eq.s32.totalorder %s14, 0
    %p49 = por %p47, %p48
    %p50 = scmp.ne.s32.totalorder %s36, %s37
    %p51 = scmp.eq.s32.totalorder %s15, 1
    %p52 = por %p50, %p51
    %p54 = scmp.ne.s32.totalorder %s37, %s53
    %p55 = scmp.eq.s32.totalorder %s15, 0
    %p56 = por %p54, %p55
    %s58 = sadd.s32 %s57, 1
    %p61 = scmp.eq.s32.totalorder %s9, 1
    %p62 = scmp.ne.s32.totalorder %s57, %s59
    %p63 = scmp.eq.s32.totalorder %s9, 0
    %p64 = por %p62, %p63
    %p65 = scmp.ne.s32.totalorder %s57, %s59
    %p66 = scmp.eq.s32.totalorder %s14, 1
    %p67 = por %p65, %p66
    %p68 = scmp.ne.s32.totalorder %s59, %s60
    %p69 = scmp.eq.s32.totalorder %s14, 0
    %p70 = por %p68, %p69
    %p71 = scmp.ne.s32.totalorder %s59, %s60
    %p72 = scmp.eq.s32.totalorder %s15, 1
    %p73 = por %p71, %p72
    %p75 = scmp.ne.s32.totalorder %s60, %s74
    %p76 = scmp.eq.s32.totalorder %s15, 0
    %p77 = por %p75, %p76
    %s79 = sadd.s32 %s78, 1
    %p82 = scmp.eq.s32.totalorder %s9, 1
    %p83 = scmp.ne.s32.totalorder %s78, %s80
    %p84 = scmp.eq.s32.totalorder %s9, 0
    %p85 = por %p83, %p84
    %p86 = scmp.ne.s32.totalorder %s78, %s80
    %p87 = scmp.eq.s32.totalorder %s14, 1
    %p88 = por %p86, %p87
    %p89 = scmp.ne.s32.totalorder %s80, %s81
    %p90 = scmp.eq.s32.totalorder %s14, 0
    %p91 = por %p89, %p90
    %p92 = scmp.ne.s32.totalorder %s80, %s81
    %p93 = scmp.eq.s32.totalorder %s15, 1
    %p94 = por %p92, %p93
    %p96 = scmp.ne.s32.totalorder %s81, %s95
    %p97 = scmp.eq.s32.totalorder %s15, 0
    %p98 = por %p96, %p97
    %s99 = ssub.s32 %s16, %s28
    %s100 = ssub.s32 %s17, %s24
    %s101 = sor.u32 %s99, %s100
    %p102 = scmp.eq.s32.totalorder %s101, 0
    %s104 = sadd.s32 %s103, 1
    %s105 = scalar_select %p102, %s103, %s104
    %p108 = pneg %p102
    %p109 = scmp.eq.s32.totalorder %s9, 1
    %p110 = por %p108, %p109
    %p111 = scmp.ne.s32.totalorder %s103, %s106
    %p112 = scmp.eq.s32.totalorder %s9, 0
    %p113 = por %p111, %p112
    %p114 = scmp.ne.s32.totalorder %s103, %s106
    %p115 = scmp.eq.s32.totalorder %s14, 1
    %p116 = por %p114, %p115
    %p117 = scmp.ne.s32.totalorder %s106, %s107
    %p118 = scmp.eq.s32.totalorder %s14, 0
    %p119 = por %p117, %p118
    %p120 = scmp.ne.s32.totalorder %s106, %s107
    %p121 = scmp.eq.s32.totalorder %s15, 1
    %p122 = por %p120, %p121
    %p124 = scmp.ne.s32.totalorder %s107, %s123
    %p125 = scmp.eq.s32.totalorder %s15, 0
    %p126 = por %p124, %p125
    %p127 = scmp.le.s32.totalorder 1, %s9
    %p128 = scmp.lt.s32.totalorder %s9, 3
    %p129 = pnand %p127, %p128
    %p130 = pneg %p129
    // Predicated region
    $region9: #{residual_pointwise.1} parent=5 // pred_check
      _
    $region10: #{residual_pointwise.1} parent=5 // pred_check_branch
      %132 = sbr.rel (%p129) target = $region12
    $region11: #{residual_pointwise.1} parent=5 // pred_region
      %s133 = ssub.s32 %s9, 1
      // Predicated region
      $region13: #{residual_pointwise.1} parent=11 // pred_check
        %p134 = pneg %p70
      $region14: #{residual_pointwise.1} parent=11 // pred_check_branch
        %136 = sbr.rel (%p134) target = $region16
      $region15: #{residual_pointwise.1} parent=11 // pred_region
        _
      $region16: #{residual_pointwise.1} parent=11 // pred_fallthru
        _
      // Predicated region
      $region17: #{residual_pointwise.1} parent=11 // pred_check
        %p137 = pneg %p91
      $region18: #{residual_pointwise.1} parent=11 // pred_check_branch
        %139 = sbr.rel (%p137) target = $region20
      $region19: #{residual_pointwise.1} parent=11 // pred_region
        _
      $region20: #{residual_pointwise.1} parent=11 // pred_fallthru
        _
    $region12: #{residual_pointwise.1} parent=5 // pred_fallthru
      _
    %p140 = scmp.lt.s32.totalorder %s9, 2
    // Predicated region
    $region21: #{residual_pointwise.1} parent=5 // pred_check
      %p141 = pneg %p140
    $region22: #{residual_pointwise.1} parent=5 // pred_check_branch
      %143 = sbr.rel (%p141) target = $region24
    $region23: #{residual_pointwise.1} parent=5 // pred_region
      // Predicated region
      $region25: #{residual_pointwise.1} parent=23 // pred_check
        %p144 = pneg %p43
      $region26: #{residual_pointwise.1} parent=23 // pred_check_branch
        %146 = sbr.rel (%p144) target = $region28
      $region27: #{residual_pointwise.1} parent=23 // pred_region
        %s147 = smul.u32 2, %s17
        %p148 = scmp.lt.s32.totalorder %s16, 1
        %s149 = scalar_select %p148, %s16, 1
        %p150 = scmp.lt.s32.totalorder %s147, 1
        %s151 = scalar_select %p150, %s147, 1
        %s152 = smul.addr %s149, 2
        %s153 = sadd.s32 %s151, %s152
        %s154 = smul.addr %s153, 4
        %s155 = scalar_lea.vmem %s0, %s154
        %s156 = smul.u32 2, %s17
      $region28: #{residual_pointwise.1} parent=23 // pred_fallthru
        _
    $region24: #{residual_pointwise.1} parent=5 // pred_fallthru
      _
    %p157 = scmp.le.s32.totalorder 1, %s9
    %p158 = scmp.lt.s32.totalorder %s9, 3
    %p159 = pnand %p157, %p158
    %p160 = pneg %p159
    // Predicated region
    $region29: #{residual_pointwise.1} parent=5 // pred_check
      _
    $region30: #{residual_pointwise.1} parent=5 // pred_check_branch
      %162 = sbr.rel (%p159) target = $region32
    $region31: #{residual_pointwise.1} parent=5 // pred_region
      %s163 = ssub.s32 %s9, 1
      %s164 = smul.u32 2, %s19
      %p165 = scmp.lt.s32.totalorder %s18, 1
      %s166 = scalar_select %p165, %s18, 1
      %p167 = scmp.lt.s32.totalorder %s164, 1
      %s168 = scalar_select %p167, %s164, 1
      %s169 = smul.addr %s166, 2
      %s170 = sadd.s32 %s168, %s169
      %s171 = smul.addr %s170, 4
      %s172 = scalar_lea.vmem %s0, %s171
      %p173 = pneg %p49
      %p174 = pneg %p46
      %p175 = pneg %p70
      %p176 = pneg %p67
      %p177 = pneg %p91
      %p178 = pneg %p88
      %p179 = pneg %p119
      %p180 = pneg %p116
      %s181 = smul.u32 2, %s19
      %p182 = scmp.lt.s32.totalorder %s18, 1
      %s183 = scalar_select %p182, %s18, 1
      %p184 = scmp.lt.s32.totalorder %s181, 1
      %s185 = scalar_select %p184, %s181, 1
      %s186 = smul.addr %s183, 2
      %s187 = sadd.s32 %s185, %s186
      %s188 = smul.addr %s187, 4
      %s189 = scalar_lea.vmem %s3, %s188
      %s190 = smul.u32 2, %s19
      %p191 = scmp.lt.s32.totalorder %s18, 1
      %s192 = scalar_select %p191, %s18, 1
      %p193 = scmp.lt.s32.totalorder %s190, 1
      %s194 = scalar_select %p193, %s190, 1
      %s195 = smul.addr %s192, 2
      %s196 = sadd.s32 %s194, %s195
      %s197 = smul.addr %s196, 4
      %s198 = scalar_lea.vmem %s0, %s197
      %s199 = smul.u32 2, %s19
      %s200 = smul.u32 2, %s19
      %p201 = scmp.lt.s32.totalorder %s18, 1
      %s202 = scalar_select %p201, %s18, 1
      %p203 = scmp.lt.s32.totalorder %s200, 1
      %s204 = scalar_select %p203, %s200, 1
      %s205 = smul.addr %s202, 2
      %s206 = sadd.s32 %s204, %s205
      %s207 = smul.addr %s206, 4
      %s208 = scalar_lea.vmem %s3, %s207
      %s209 = smul.u32 2, %s19
      %v210 = vld [vmem:[%s1] sm:$0xf]
      %v211 = vld [vmem:[%s2] sm:$0xf]
      %v212 = vld [vmem:[%s198] sm:$0xff]
      %214 = vset.pattern.permute.xlu0 0
      %215 = vperm.xlu0 %214, %v210
      %v216 = vpop.permute.xlu0 %215
      %v219 = vperm.slane %v212, 0
      %v220 = vperm.slane %v212, 4
      %v223 = vperm.slane %v219, 0
      %v224 = vperm.slane %v220, 0
      %v225 = vmul.f32 %v216, %v223
      %v226 = vmul.f32 %v216, %v224
      %227 = vset.pattern.permute.xlu0 1
      %228 = vperm.xlu0 %227, %v210
      %v229 = vpop.permute.xlu0 %228
      %v231 = vperm.slane %v212, 1
      %v232 = vperm.slane %v212, 5
      %v235 = vperm.slane %v231, 1
      %v236 = vperm.slane %v232, 1
      %v237 = vmul.f32 %v229, %v235
      %v238 = vmul.f32 %v229, %v236
      %239 = vset.pattern.permute.xlu0 2
      %240 = vperm.xlu0 %239, %v210
      %v241 = vpop.permute.xlu0 %240
      %v243 = vperm.slane %v212, 2
      %v244 = vperm.slane %v212, 6
      %v247 = vperm.slane %v243, 2
      %v248 = vperm.slane %v244, 2
      %v249 = vmul.f32 %v241, %v247
      %v250 = vmul.f32 %v241, %v248
      %251 = vset.pattern.permute.xlu0 3
      %252 = vperm.xlu0 %251, %v210
      %v253 = vpop.permute.xlu0 %252
      %v255 = vperm.slane %v212, 3
      %v256 = vperm.slane %v212, 7
      %v259 = vperm.slane %v255, 3
      %v260 = vperm.slane %v256, 3
      %v261 = vmul.f32 %v253, %v259
      %v262 = vmul.f32 %v253, %v260
      %v263 = vadd.f32 %v225, %v237
      %v264 = vadd.f32 %v226, %v238
      %v265 = vadd.f32 %v249, %v261
      %v266 = vadd.f32 %v250, %v262
      %v267 = vadd.f32 %v263, %v265
      %v268 = vadd.f32 %v264, %v266
      %270 = vset.pattern.permute.xlu0 0
      %271 = vperm.xlu0 %270, %v211
      %v272 = vpop.permute.xlu0 %271
      %v274 = vadd.f32 %v267, %v272
      %v275 = vadd.f32 %v268, %v272
      %v276 = vmul.f32 %v274, %v274
      %v277 = vmul.f32 %v275, %v275
      %v278 = vmul.f32 %v274, %v276
      %v279 = vmul.f32 %v275, %v277
      %v280 = vmul.f32 %v278, 0.044715
      %v281 = vmul.f32 %v279, 0.044715
      %v282 = vadd.f32 %v274, %v280
      %v283 = vadd.f32 %v275, %v281
      %v284 = vmul.f32 %v282, 0.7978846
      %v285 = vmul.f32 %v283, 0.7978846
      %v286 = vtanh.pop %v284
      %v287 = vtanh.pop %v285
      %v288 = vadd.f32 %v286, 1.0
      %v289 = vadd.f32 %v287, 1.0
      %v290 = vmul.f32 %v288, 0.5
      %v291 = vmul.f32 %v289, 0.5
      %v292 = vmul.f32 %v274, %v290
      %v293 = vmul.f32 %v275, %v291
      %294 = vst [vmem:[#allocation1] ss:$2 sm:$0xff] %v212
      %v295 = vld.sshfl [vmem:[#allocation1] sm:$0xff pattern:$0x75316420]
      %v296 = vld.sshfl [vmem:[#allocation1 + $0x8] sm:$0xff pattern:$0x75316420]
      %v299 = vadd.f32 %v292, %v295
      %v300 = vadd.f32 %v293, %v296
      %v303 = vrot.slane %v300, 4
      %vm304 = vcmask 1043456
      %v305 = vsel %vm304, %v299, %v303
      %307 = vst [vmem:[%s208] sm:$0xff] %v305
      %s308 = smul.u32 2, %s19
      %p309 = scmp.lt.s32.totalorder %s18, 1
      %s310 = scalar_select %p309, %s18, 1
      %p311 = scmp.lt.s32.totalorder %s308, 1
      %s312 = scalar_select %p311, %s308, 1
      %s313 = smul.addr %s310, 2
      %s314 = sadd.s32 %s312, %s313
      %s315 = smul.addr %s314, 4
      %s316 = scalar_lea.vmem %s3, %s315
      // Predicated region
      $region33: #{residual_pointwise.1} parent=31 // pred_check
        %p317 = pneg %p116
      $region34: #{residual_pointwise.1} parent=31 // pred_check_branch
        %319 = sbr.rel (%p317) target = $region36
      $region35: #{residual_pointwise.1} parent=31 // pred_region
        %s320 = smul.u32 2, %s19
      $region36: #{residual_pointwise.1} parent=31 // pred_fallthru
        _
    $region32: #{residual_pointwise.1} parent=5 // pred_fallthru
      _
    %p321 = scmp.le.s32.totalorder 2, %s9
    // Predicated region
    $region37: #{residual_pointwise.1} parent=5 // pred_check
      %p322 = pneg %p321
    $region38: #{residual_pointwise.1} parent=5 // pred_check_branch
      %324 = sbr.rel (%p322) target = $region40
    $region39: #{residual_pointwise.1} parent=5 // pred_region
      %s325 = ssub.s32 %s9, 2
      // Predicated region
      $region41: #{residual_pointwise.1} parent=39 // pred_check
        %p326 = pneg %p122
      $region42: #{residual_pointwise.1} parent=39 // pred_check_branch
        %328 = sbr.rel (%p326) target = $region44
      $region43: #{residual_pointwise.1} parent=39 // pred_region
        %s329 = smul.u32 2, %s21
        %p330 = scmp.lt.s32.totalorder %s20, 1
        %s331 = scalar_select %p330, %s20, 1
        %p332 = scmp.lt.s32.totalorder %s329, 1
        %s333 = scalar_select %p332, %s329, 1
        %s334 = smul.addr %s331, 2
        %s335 = sadd.s32 %s333, %s334
        %s336 = smul.addr %s335, 4
        %s337 = scalar_lea.vmem %s3, %s336
      $region44: #{residual_pointwise.1} parent=39 // pred_fallthru
        _
    $region40: #{residual_pointwise.1} parent=5 // pred_fallthru
      _
  $region6: #{residual_pointwise.1} parent=0 // loop_footer
    %s13 = sadd.s32 1, %s9
  $region7: #{residual_pointwise.1} parent=0 // loop_footer_branch
    %8 = sbr.rel target = $region3
  $region8: #{residual_pointwise.1} parent=0 // loop_exit
    _

</llo_original>
